<compile_context>
chip_gen: v6e
topology: v6e:2x2x1
jax: 0.10.0
libtpu: 0.0.40
codegen_flags: <defaults>
</compile_context>

<pallas_src>
import jax
import jax.numpy as jnp
from jax import lax
from jax.experimental import pallas as pl
from jax.experimental.pallas import tpu as pltpu


def _round_up(x, m):
    return ((x + m - 1) // m) * m


def increasing_nn_kernel(x_ref, w1_ref, b1_ref, w2_ref, b2_ref, w3t_ref, b3_ref, o_ref):
    """One batch tile, batch on lanes.

    x_ref  : [in,  TB]
    w1_ref : [H,   in]   (PyTorch fc1.weight)
    b1_ref : [H,   1]
    w2_ref : [H,   H]    (PyTorch fc2.weight)
    b2_ref : [H,   1]
    w3t_ref: [H,   out]  (transposed PyTorch fc3.weight)
    b3_ref : [out, 1]
    o_ref  : [out, TB]
    """
    in_size = x_ref.shape[0]
    out_size = o_ref.shape[0]

    x = jnp.tanh(x_ref[...])                                  # [in, TB]

    # fc1: K == 1 -> outer product == VPU broadcast-multiply (no MXU push/pop).
    if in_size == 1:
        z1 = w1_ref[...] * x                                  # [H,1]*[1,TB] -> [H,TB]
    else:
        z1 = jnp.dot(w1_ref[...], x, preferred_element_type=jnp.float32)
    h1 = jnp.tanh(z1 + b1_ref[...])                           # [H, TB]

    # fc2: the only real matmul (H x H) -> keep on the MXU, f32 accumulate.
    z2 = jnp.dot(w2_ref[...], h1, preferred_element_type=jnp.float32)
    h2 = jnp.tanh(z2 + b2_ref[...])                           # [H, TB]

    # fc3: N == 1 -> 16-wide sublane reduction (XLU), no MXU.
    if out_size == 1:
        z3 = jnp.sum(w3t_ref[...] * h2, axis=0, keepdims=True)   # [1, TB]
    else:
        z3 = lax.dot_general(w3t_ref[...], h2, (((0,), (0,)), ((), ())),
                             preferred_element_type=jnp.float32)  # [out, TB]
    h3 = z3 + b3_ref[...]

    # sigmoid(z) = 0.5 * (tanh(z/2) + 1): reuse the tanh EUP path (no exp/div).
    o_ref[...] = (0.5 * (jnp.tanh(0.5 * h3) + 1.0)).astype(o_ref.dtype)


# Largest batch tile (lanes).  Per-tile VMEM at TB_CAP: x/out streams are
# [1, tb] f32 (≈256 KiB double-buffered each) and the [16, tb] f32
# intermediates are ≈2 MiB each — well under the 32 MiB scoped budget on
# every chip (v5e/v6e/v7x).
_TB_CAP = 32768


def increasing_nn_forward(x, w1, b1, w2, b2, w3, b3):
    """Forward pass matching IncreasingNN (PyTorch parameter layout).

    x : [B, in];  w1: [H, in], b1: [H];  w2: [H, H], b2: [H];  w3: [out, H], b3: [out]
    returns [B, out]
    """
    B, in_size = x.shape
    H = w1.shape[0]
    out_size = w3.shape[0]

    # --- Tile selection: pick tb first, then pad the batch to a multiple of it.
    B_pad128 = _round_up(max(B, 1), 128)          # lane-width alignment
    if B_pad128 <= _TB_CAP:
        # Single tile covering the whole batch: grid=(1,), zero per-step
        # overhead on single-TC chips (v5e/v6e), minimal launch cost everywhere.
        tb = B_pad128
        n_tiles = 1
    else:
        tb = _TB_CAP
        n_tiles = pl.cdiv(B_pad128, tb)
        # Keep the (parallel) grid length even so both v7x TensorCores get work;
        # costs at most one mostly-padded ~0.35 µs step on single-TC chips.
        if n_tiles % 2 == 1:
            n_tiles += 1
    B_pad = tb * n_tiles
    grid = (n_tiles,)

    # Wrapper-side layout plumbing: one fused pad of x.T (no zeros+scatter).
    x_t = jnp.pad(x.astype(jnp.float32).T, ((0, 0), (0, B_pad - B)))

    w1k = w1.astype(jnp.float32)                      # [H, in]
    b1k = b1.astype(jnp.float32).reshape(H, 1)
    w2k = w2.astype(jnp.float32)                      # [H, H]
    b2k = b2.astype(jnp.float32).reshape(H, 1)
    w3k = w3.astype(jnp.float32).T                    # [H, out]
    b3k = b3.astype(jnp.float32).reshape(out_size, 1)

    def const(shape):
        # Weights / biases: full-extent blocks, resident in VMEM for all steps.
        # Buffered(1): block index never changes, so skip the second pipeline buffer.
        return pl.BlockSpec(shape, lambda i: (0, 0), pipeline_mode=pl.Buffered(1))

    out_t = pl.pallas_call(
        increasing_nn_kernel,
        out_shape=jax.ShapeDtypeStruct((out_size, B_pad), jnp.float32),
        grid=grid,
        in_specs=[
            pl.BlockSpec((in_size, tb), lambda i: (0, i)),   # x: streamed over batch
            const((H, in_size)),
            const((H, 1)),
            const((H, H)),
            const((H, 1)),
            const((H, out_size)),
            const((out_size, 1)),
        ],
        out_specs=pl.BlockSpec((out_size, tb), lambda i: (0, i)),
        compiler_params=pltpu.CompilerParams(
            dimension_semantics=("parallel",),   # shard batch over both TCs on v7x
            vmem_limit_bytes=32 * 1024 * 1024,   # safe on v7x's smaller VMEM too
        ),
    )(x_t, w1k, b1k, w2k, b2k, w3k, b3k)

    return out_t[:, :B].T


def init_params(key, input_size=1, hidden_size=16, output_size=1):
    # Mirror nn.Linear init (uniform +/- 1/sqrt(fan_in)), then abs() on weights
    # as done in IncreasingNN.__init__.  PyTorch layout: W is [out, in].
    k1, k2, k3, k4, k5, k6 = jax.random.split(key, 6)

    def linear_init(kw, kb, fan_in, fan_out):
        bound = 1.0 / jnp.sqrt(jnp.float32(fan_in))
        w = jax.random.uniform(kw, (fan_out, fan_in), jnp.float32, -bound, bound)
        b = jax.random.uniform(kb, (fan_out,), jnp.float32, -bound, bound)
        return w, b

    w1, b1 = linear_init(k1, k2, input_size, hidden_size)
    w2, b2 = linear_init(k3, k4, hidden_size, hidden_size)
    w3, b3 = linear_init(k5, k6, hidden_size, output_size)
    w1, w2, w3 = jnp.abs(w1), jnp.abs(w2), jnp.abs(w3)
    return w1, b1, w2, b2, w3, b3


def reference_forward(x, w1, b1, w2, b2, w3, b3):
    h = jnp.tanh(x)
    h = jnp.tanh(h @ w1.T + b1)
    h = jnp.tanh(h @ w2.T + b2)
    return jax.nn.sigmoid(h @ w3.T + b3)


if __name__ == "__main__":
    key = jax.random.PRNGKey(0)
    kx, kp = jax.random.split(key)

    input_size, hidden_size, output_size = 1, 16, 1
    params = init_params(kp, input_size, hidden_size, output_size)

    # Small batch: pads to a single 128-lane tile, grid=(1,).
    x_small = jax.random.normal(kx, (8, input_size), jnp.float32)
    out_small = jax.block_until_ready(increasing_nn_forward(x_small, *params))
    ref_small = reference_forward(x_small, *params)
    assert out_small.shape == (8, output_size)
    assert jnp.allclose(out_small, ref_small, atol=1e-5, rtol=1e-5)

    # Non-multiple-of-128 batch: new tiling logic gives tb=384, grid=(1,)
    # (previously this degraded to three 128-lane steps).
    x_big = jax.random.normal(kx, (300, input_size), jnp.float32)
    out_big = jax.block_until_ready(increasing_nn_forward(x_big, *params))
    ref_big = reference_forward(x_big, *params)
    assert out_big.shape == (300, output_size)
    assert jnp.allclose(out_big, ref_big, atol=1e-5, rtol=1e-5)

    print("KERNEL_OK")
</pallas_src>

<mosaic_0001>
module attributes {stable_mosaic.version = 11 : i64} {
  func.func @increasing_nn_kernel(%arg0: i32, %arg1: memref<1x128xf32, #tpu.memory_space<vmem>>, %arg2: memref<16x1xf32, #tpu.memory_space<vmem>>, %arg3: memref<16x1xf32, #tpu.memory_space<vmem>>, %arg4: memref<16x16xf32, #tpu.memory_space<vmem>>, %arg5: memref<16x1xf32, #tpu.memory_space<vmem>>, %arg6: memref<16x1xf32, #tpu.memory_space<vmem>>, %arg7: memref<1x1xf32, #tpu.memory_space<vmem>>, %arg8: memref<1x128xf32, #tpu.memory_space<vmem>>) attributes {dimension_semantics = [#tpu.dimension_semantics<parallel>], iteration_bounds = array<i64: 1>, scalar_prefetch = 0 : i64, scratch_operands = 0 : i64, tpu.core_type = #tpu.core_type<tc>, window_params = [{transform_indices = @transform_0, window_bounds = array<i64: 1, 128>}, {pipeline_mode = #tpu.pipeline_mode<synchronous>, transform_indices = @transform_1, window_bounds = array<i64: 16, 1>}, {pipeline_mode = #tpu.pipeline_mode<synchronous>, transform_indices = @transform_2, window_bounds = array<i64: 16, 1>}, {pipeline_mode = #tpu.pipeline_mode<synchronous>, transform_indices = @transform_3, window_bounds = array<i64: 16, 16>}, {pipeline_mode = #tpu.pipeline_mode<synchronous>, transform_indices = @transform_4, window_bounds = array<i64: 16, 1>}, {pipeline_mode = #tpu.pipeline_mode<synchronous>, transform_indices = @transform_5, window_bounds = array<i64: 16, 1>}, {pipeline_mode = #tpu.pipeline_mode<synchronous>, transform_indices = @transform_6, window_bounds = array<i64: 1, 1>}, {transform_indices = @transform_7, window_bounds = array<i64: 1, 128>}]} {
    %c0 = arith.constant 0 : index
    %c0_0 = arith.constant 0 : index
    %0 = vector.load %arg1[%c0, %c0_0] : memref<1x128xf32, #tpu.memory_space<vmem>>, vector<1x128xf32>
    %1 = math.tanh %0 : vector<1x128xf32>
    %c0_1 = arith.constant 0 : index
    %c0_2 = arith.constant 0 : index
    %2 = vector.load %arg2[%c0_1, %c0_2] : memref<16x1xf32, #tpu.memory_space<vmem>>, vector<16x1xf32>
    %3 = vector.broadcast %2 : vector<16x1xf32> to vector<16x128xf32>
    %4 = vector.broadcast %1 : vector<1x128xf32> to vector<16x128xf32>
    %5 = arith.mulf %3, %4 : vector<16x128xf32>
    %c0_3 = arith.constant 0 : index
    %c0_4 = arith.constant 0 : index
    %6 = vector.load %arg3[%c0_3, %c0_4] : memref<16x1xf32, #tpu.memory_space<vmem>>, vector<16x1xf32>
    %7 = vector.broadcast %6 : vector<16x1xf32> to vector<16x128xf32>
    %8 = arith.addf %5, %7 : vector<16x128xf32>
    %9 = math.tanh %8 : vector<16x128xf32>
    %c0_5 = arith.constant 0 : index
    %c0_6 = arith.constant 0 : index
    %10 = vector.load %arg4[%c0_5, %c0_6] : memref<16x16xf32, #tpu.memory_space<vmem>>, vector<16x16xf32>
    %cst = arith.constant dense<0.000000e+00> : vector<16x128xf32>
    %11 = tpu.matmul %10, %9, %cst {dimension_numbers = #tpu.dot_dimension_numbers<[1], [0], [0], [1], [0, 0, 1, 1], [], []>} : vector<16x16xf32>, vector<16x128xf32>, vector<16x128xf32> -> vector<16x128xf32>
    %c0_7 = arith.constant 0 : index
    %c0_8 = arith.constant 0 : index
    %12 = vector.load %arg5[%c0_7, %c0_8] : memref<16x1xf32, #tpu.memory_space<vmem>>, vector<16x1xf32>
    %13 = vector.broadcast %12 : vector<16x1xf32> to vector<16x128xf32>
    %14 = arith.addf %11, %13 : vector<16x128xf32>
    %15 = math.tanh %14 : vector<16x128xf32>
    %c0_9 = arith.constant 0 : index
    %c0_10 = arith.constant 0 : index
    %16 = vector.load %arg6[%c0_9, %c0_10] : memref<16x1xf32, #tpu.memory_space<vmem>>, vector<16x1xf32>
    %17 = vector.broadcast %16 : vector<16x1xf32> to vector<16x128xf32>
    %18 = arith.mulf %17, %15 : vector<16x128xf32>
    %cst_11 = arith.constant dense<0.000000e+00> : vector<128xf32>
    %19 = vector.multi_reduction <add>, %18, %cst_11 [0] : vector<16x128xf32> to vector<128xf32>
    %20 = vector.shape_cast %19 : vector<128xf32> to vector<1x128xf32>
    %c0_12 = arith.constant 0 : index
    %c0_13 = arith.constant 0 : index
    %21 = vector.load %arg7[%c0_12, %c0_13] : memref<1x1xf32, #tpu.memory_space<vmem>>, vector<1x1xf32>
    %22 = vector.broadcast %21 : vector<1x1xf32> to vector<1x128xf32>
    %23 = arith.addf %20, %22 : vector<1x128xf32>
    %cst_14 = arith.constant 5.000000e-01 : f32
    %24 = vector.broadcast %cst_14 : f32 to vector<1x128xf32>
    %25 = arith.mulf %24, %23 : vector<1x128xf32>
    %26 = math.tanh %25 : vector<1x128xf32>
    %cst_15 = arith.constant 1.000000e+00 : f32
    %27 = vector.broadcast %cst_15 : f32 to vector<1x128xf32>
    %28 = arith.addf %26, %27 : vector<1x128xf32>
    %cst_16 = arith.constant 5.000000e-01 : f32
    %29 = vector.broadcast %cst_16 : f32 to vector<1x128xf32>
    %30 = arith.mulf %29, %28 : vector<1x128xf32>
    %c0_17 = arith.constant 0 : index
    %c0_18 = arith.constant 0 : index
    %31 = vector.load %arg8[%c0_17, %c0_18] : memref<1x128xf32, #tpu.memory_space<vmem>>, vector<1x128xf32>
    tpu.vector_store %arg8[%c0_17, %c0_18], %30 {strides = array<i32>} : memref<1x128xf32, #tpu.memory_space<vmem>>, vector<1x128xf32>,
    return
  }
  func.func @transform_0(%arg0: i32) -> (i32, i32) {
    %c0_i32 = arith.constant 0 : i32
    %c0_i32_0 = arith.constant 0 : i32
    return %c0_i32, %arg0 : i32, i32
  }
  func.func @transform_1(%arg0: i32) -> (i32, i32) {
    %c0_i32 = arith.constant 0 : i32
    %c0_i32_0 = arith.constant 0 : i32
    %c0_i32_1 = arith.constant 0 : i32
    return %c0_i32, %c0_i32_0 : i32, i32
  }
  func.func @transform_2(%arg0: i32) -> (i32, i32) {
    %c0_i32 = arith.constant 0 : i32
    %c0_i32_0 = arith.constant 0 : i32
    %c0_i32_1 = arith.constant 0 : i32
    return %c0_i32, %c0_i32_0 : i32, i32
  }
  func.func @transform_3(%arg0: i32) -> (i32, i32) {
    %c0_i32 = arith.constant 0 : i32
    %c0_i32_0 = arith.constant 0 : i32
    %c0_i32_1 = arith.constant 0 : i32
    return %c0_i32, %c0_i32_0 : i32, i32
  }
  func.func @transform_4(%arg0: i32) -> (i32, i32) {
    %c0_i32 = arith.constant 0 : i32
    %c0_i32_0 = arith.constant 0 : i32
    %c0_i32_1 = arith.constant 0 : i32
    return %c0_i32, %c0_i32_0 : i32, i32
  }
  func.func @transform_5(%arg0: i32) -> (i32, i32) {
    %c0_i32 = arith.constant 0 : i32
    %c0_i32_0 = arith.constant 0 : i32
    %c0_i32_1 = arith.constant 0 : i32
    return %c0_i32, %c0_i32_0 : i32, i32
  }
  func.func @transform_6(%arg0: i32) -> (i32, i32) {
    %c0_i32 = arith.constant 0 : i32
    %c0_i32_0 = arith.constant 0 : i32
    %c0_i32_1 = arith.constant 0 : i32
    return %c0_i32, %c0_i32_0 : i32, i32
  }
  func.func @transform_7(%arg0: i32) -> (i32, i32) {
    %c0_i32 = arith.constant 0 : i32
    %c0_i32_0 = arith.constant 0 : i32
    return %c0_i32, %arg0 : i32, i32
  }
}

</mosaic_0001>

<llo_original>
// kernel: tpu_custom_call.1
$region0: #{tpu_custom_call.1}
  #allocation0 [shape = 'u32[]', space=smem, size = 0x4, offset = 0x4, fixed_abs, tag = 'smem constant byte address 0x4 - core index']
  #allocation1 [shape = 'u32[144,128]{1,0:T(1,128)}', space=vmem, size = 0x12000, scoped, tag = 'internal scratch']
  #allocation2 [shape = 'f32[1,1]{1,0:T(1,128)S(1)}', space=vmem, size = 0x200, scoped, tag = 'scoped memory for tpu_custom_call.1']
  %s0 = inlined_call_operand.vmem [shape: f32[1,128], index: 0, kind: input, shape index: {}]
  %s1 = inlined_call_operand.vmem [shape: f32[16,1], index: 1, kind: input, shape index: {}]
  %s2 = inlined_call_operand.vmem [shape: f32[16,1], index: 2, kind: input, shape index: {}]
  %s3 = inlined_call_operand.vmem [shape: f32[16,16], index: 3, kind: input, shape index: {}]
  %s4 = inlined_call_operand.vmem [shape: f32[16,1], index: 4, kind: input, shape index: {}]
  %s5 = inlined_call_operand.vmem [shape: f32[16,1], index: 5, kind: input, shape index: {}]
  %s6 = inlined_call_operand.<no memory space> [shape: f32[1,1], index: 6, kind: input, shape index: {}]
  %s7 = inlined_call_operand.hbm [shape: f32[1,128], index: 7, kind: output, shape index: {}]
  %s8 = sld [smem:[#allocation0]]
  $region38: #{tpu_custom_call.1} parent=0
    _
  %s10 = ssub.s32 1, %s8
  %s11 = scalar_select 0, %s10, %s8
  %v12 = vstv %s6
  %13 = vst [vmem:[#allocation2] sm:$0x1] %v12
  $region1: #{tpu_custom_call.1} parent=0
    #allocation3 [shape = 'u8[512]{0}', space=vmem, size = 0x400, scoped, tag = 'output window, operand 0, single buffered']
    #allocation4 [shape = 's32[1]{0}', space=sflag, size = 0x4, scoped, tag = 'scoped memory for tpu_custom_call.1']
    %14 = vsyncpa [#allocation4], 0
    // Predicated region
    $region2: #{tpu_custom_call.1} parent=1 // pred_check
      _
    $region3: #{tpu_custom_call.1} parent=1 // pred_check_branch
      %16 = sbr.rel (0) target = $region5
    $region4: #{tpu_custom_call.1} parent=1 // pred_region
      _
    $region5: #{tpu_custom_call.1} parent=1 // pred_fallthru
      _
    // Predicated region
    $region6: #{tpu_custom_call.1} parent=1 // pred_check
      _
    $region7: #{tpu_custom_call.1} parent=1 // pred_check_branch
      %18 = sbr.rel (0) target = $region9
    $region8: #{tpu_custom_call.1} parent=1 // pred_region
      _
    $region9: #{tpu_custom_call.1} parent=1 // pred_fallthru
      _
    // Predicated region
    $region10: #{tpu_custom_call.1} parent=1 // pred_check
      _
    $region11: #{tpu_custom_call.1} parent=1 // pred_check_branch
      %20 = sbr.rel (0) target = $region13
    $region12: #{tpu_custom_call.1} parent=1 // pred_region
      _
    $region13: #{tpu_custom_call.1} parent=1 // pred_fallthru
      _
    // Predicated region
    $region14: #{tpu_custom_call.1} parent=1 // pred_check
      _
    $region15: #{tpu_custom_call.1} parent=1 // pred_check_branch
      %22 = sbr.rel (0) target = $region17
    $region16: #{tpu_custom_call.1} parent=1 // pred_region
      _
    $region17: #{tpu_custom_call.1} parent=1 // pred_fallthru
      _
    // Predicated region
    $region18: #{tpu_custom_call.1} parent=1 // pred_check
      _
    $region19: #{tpu_custom_call.1} parent=1 // pred_check_branch
      %24 = sbr.rel (0) target = $region21
    $region20: #{tpu_custom_call.1} parent=1 // pred_region
      _
    $region21: #{tpu_custom_call.1} parent=1 // pred_fallthru
      _
    // Predicated region
    $region22: #{tpu_custom_call.1} parent=1 // pred_check
      _
    $region23: #{tpu_custom_call.1} parent=1 // pred_check_branch
      %26 = sbr.rel (0) target = $region25
    $region24: #{tpu_custom_call.1} parent=1 // pred_region
      _
    $region25: #{tpu_custom_call.1} parent=1 // pred_fallthru
      _
    // Predicated region
    $region26: #{tpu_custom_call.1} parent=1 // pred_check
      _
    $region27: #{tpu_custom_call.1} parent=1 // pred_check_branch
      %28 = sbr.rel (0) target = $region29
    $region28: #{tpu_custom_call.1} parent=1 // pred_region
      _
    $region29: #{tpu_custom_call.1} parent=1 // pred_fallthru
      _
    %v29 = vld [vmem:[%s0] sm:$0x1]
    %v30 = vtanh.pop %v29
    %v31 = vld [vmem:[%s1] sm:$0xff]
    %v32 = vld [vmem:[%s1 + $0x8] sm:$0xff]
    %34 = vset.pattern.permute.xlu0 0
    %35 = vperm.xlu0 %34, %v31
    %v36 = vpop.permute.xlu0 %35
    %39 = vset.pattern.permute.xlu0 0
    %40 = vperm.xlu0 %39, %v32
    %v41 = vpop.permute.xlu0 %40
    %v44 = vlaneseq
    %v45 = vshrl.u32 %v44, 7
    %v46 = vsub.s32 0, %v45
    %v47 = vrot.slane %v30, %v46
    %v49 = vmul.f32 %v36, %v47
    %v50 = vmul.f32 %v41, %v47
    %v51 = vld [vmem:[%s2] sm:$0xff]
    %v52 = vld [vmem:[%s2 + $0x8] sm:$0xff]
    %54 = vset.pattern.permute.xlu0 0
    %55 = vperm.xlu0 %54, %v51
    %v56 = vpop.permute.xlu0 %55
    %59 = vset.pattern.permute.xlu0 0
    %60 = vperm.xlu0 %59, %v52
    %v61 = vpop.permute.xlu0 %60
    %v63 = vadd.f32 %v49, %v56
    %v64 = vadd.f32 %v50, %v61
    %v65 = vtanh.pop %v63
    %v66 = vtanh.pop %v64
    %v67 = vld [vmem:[%s3] sm:$0xff]
    %v68 = vld [vmem:[%s3 + $0x8] sm:$0xff]
    %v69 = vld [vmem:[%s4] sm:$0xff]
    %v70 = vld [vmem:[%s4 + $0x8] sm:$0xff]
    %72 = vset.pattern.permute.xlu0 0
    %73 = vperm.xlu0 %72, %v69
    %v74 = vpop.permute.xlu0 %73
    %77 = vset.pattern.permute.xlu0 0
    %78 = vperm.xlu0 %77, %v70
    %v79 = vpop.permute.xlu0 %78
    %vm81 = vcmask 130048
    %v83 = vsel %vm81, %v67, 0
    %v86 = vsel %vm81, %v68, 0
    %88 = vmatprep.subr.mxu0 0.0
    %89 = vmatpush1.msra.mxu0 0.0
    %90 = vmatprep.subr.mxu0 0.0
    %91 = vmatpush1.msra.mxu0 0.0
    %92 = vmatprep.subr.mxu0 0.0
    %93 = vmatpush1.msra.mxu0 0.0
    %94 = vmatprep.subr.mxu0 0.0
    %95 = vmatpush1.msra.mxu0 0.0
    %96 = vmatprep.subr.mxu0 0.0
    %97 = vmatpush1.msra.mxu0 0.0
    %98 = vmatprep.subr.mxu0 0.0
    %99 = vmatpush1.msra.mxu0 0.0
    %100 = vmatprep.subr.mxu0 0.0
    %101 = vmatpush1.msra.mxu0 0.0
    %102 = vmatprep.subr.mxu0 0.0
    %103 = vmatpush1.msra.mxu0 0.0
    %104 = vmatprep.subr.mxu0 0.0
    %105 = vmatpush1.msra.mxu0 0.0
    %106 = vmatprep.subr.mxu0 0.0
    %107 = vmatpush1.msra.mxu0 0.0
    %108 = vmatprep.subr.mxu0 0.0
    %109 = vmatpush1.msra.mxu0 0.0
    %110 = vmatprep.subr.mxu0 0.0
    %111 = vmatpush1.msra.mxu0 0.0
    %112 = vmatprep.subr.mxu0 0.0
    %113 = vmatpush1.msra.mxu0 0.0
    %114 = vmatprep.subr.mxu0 0.0
    %115 = vmatpush1.msra.mxu0 0.0
    %116 = vmatprep.subr.mxu0 0.0
    %117 = vmatpush1.msra.mxu0 %v66
    %118 = vmatprep.subr.mxu0 0.0
    %119 = vmatpush1.msra.mxu0 %v65
    %120 = vmatprep.subr.mxu0 0.0
    %121 = vmatpush2.msra.mxu0 0.0
    %122 = vmatprep.subr.mxu0 0.0
    %123 = vmatpush2.msra.mxu0 0.0
    %124 = vmatprep.subr.mxu0 0.0
    %125 = vmatpush2.msra.mxu0 0.0
    %126 = vmatprep.subr.mxu0 0.0
    %127 = vmatpush2.msra.mxu0 0.0
    %128 = vmatprep.subr.mxu0 0.0
    %129 = vmatpush2.msra.mxu0 0.0
    %130 = vmatprep.subr.mxu0 0.0
    %131 = vmatpush2.msra.mxu0 0.0
    %132 = vmatprep.subr.mxu0 0.0
    %133 = vmatpush2.msra.mxu0 0.0
    %134 = vmatprep.subr.mxu0 0.0
    %135 = vmatpush2.msra.mxu0 0.0
    %136 = vmatprep.subr.mxu0 0.0
    %137 = vmatpush2.msra.mxu0 0.0
    %138 = vmatprep.subr.mxu0 0.0
    %139 = vmatpush2.msra.mxu0 0.0
    %140 = vmatprep.subr.mxu0 0.0
    %141 = vmatpush2.msra.mxu0 0.0
    %142 = vmatprep.subr.mxu0 0.0
    %143 = vmatpush2.msra.mxu0 0.0
    %144 = vmatprep.subr.mxu0 0.0
    %145 = vmatpush2.msra.mxu0 0.0
    %146 = vmatprep.subr.mxu0 0.0
    %147 = vmatpush2.msra.mxu0 0.0
    %148 = vmatprep.subr.mxu0 0.0
    %149 = vmatpush2.msra.mxu0 0.0
    %150 = vmatprep.subr.mxu0 0.0
    %151 = vmatpush2.msra.mxu0 0.0
    %152 = vmatprep.mubr.f32.mxu0 0.0
    %153 = vmatmul.mubr.f32.gmra.mxu0 %v83
    %v154 = vpop.f32.mrf.mxu0
    %v155 = vadd.f32 %v74, %v154
    %v156 = vpop.f32.mrf.mxu0
    %157 = vmatprep.mubr.f32.mxu0 0.0
    %158 = vmatmul.mubr.f32.gmra.mxu0 %v86
    %v159 = vpop.f32.mrf.mxu0
    %v160 = vadd.f32 %v79, %v159
    %v161 = vpop.f32.mrf.mxu0
    %162 = vdwg.mxu0
    %v163 = vtanh.pop %v155
    %v164 = vtanh.pop %v160
    %v165 = vld [vmem:[%s5] sm:$0xff]
    %v166 = vld [vmem:[%s5 + $0x8] sm:$0xff]
    %168 = vset.pattern.permute.xlu0 0
    %169 = vperm.xlu0 %168, %v165
    %v170 = vpop.permute.xlu0 %169
    %173 = vset.pattern.permute.xlu0 0
    %174 = vperm.xlu0 %173, %v166
    %v175 = vpop.permute.xlu0 %174
    %v177 = vmul.f32 %v170, %v163
    %v178 = vmul.f32 %v175, %v164
    %v179 = vadd.f32 %v177, %v178
    %v180 = vrot.slane %v179, 4
    %v181 = vadd.f32 %v179, %v180
    %v182 = vrot.slane %v181, 2
    %v183 = vadd.f32 %v181, %v182
    %v184 = vrot.slane %v183, 1
    %v185 = vadd.f32 %v183, %v184
    %v186 = vld [vmem:[#allocation2] sm:$0x1]
    %188 = vset.pattern.permute.xlu0 0
    %189 = vperm.xlu0 %188, %v186
    %v190 = vpop.permute.xlu0 %189
    %v192 = vlaneseq
    %v193 = vshrl.u32 %v192, 7
    %v194 = vsub.s32 0, %v193
    %v195 = vrot.slane %v190, %v194
    %v196 = vadd.f32 %v185, %v195
    %v197 = vmul.f32 %v196, 0.5
    %v198 = vtanh.pop %v197
    %v199 = vadd.f32 %v198, 1.0
    %v200 = vmul.f32 %v199, 0.5
    %201 = vst [vmem:[#allocation3] sm:$0x1] %v200
    // Predicated region
    $region30: #{tpu_custom_call.1} parent=1 // pred_check
      _
    $region31: #{tpu_custom_call.1} parent=1 // pred_check_branch
      %203 = sbr.rel (0) target = $region33
    $region32: #{tpu_custom_call.1} parent=1 // pred_region
      %s205 = ssub.s32 16, 16
      %206 = vsyncadd [#allocation4], %s205
      %s208 = sshll.u32 [#allocation3], 4
      %s209 = int_to_ptr.vmem [resolvable:$true] %s208
      %211 = dma.vmem_to_hbm [thread:$0]  %s209, 16, %s7, [#allocation4]
    $region33: #{tpu_custom_call.1} parent=1 // pred_fallthru
      _
    // Predicated region
    $region34: #{tpu_custom_call.1} parent=1 // pred_check
      _
    $region35: #{tpu_custom_call.1} parent=1 // pred_check_branch
      %213 = sbr.rel (0) target = $region37
    $region36: #{tpu_custom_call.1} parent=1 // pred_region
      %214 = dma.done [#allocation4], 16
    $region37: #{tpu_custom_call.1} parent=1 // pred_fallthru
      _
    %215 = vsyncpa [#allocation4], 1

</llo_original>
